<compile_context>
chip_gen: v7x
topology: tpu7x:2x2x1
jax: 0.10.0
libtpu: 0.0.40
codegen_flags: <defaults>
</compile_context>

<pallas_src>
import math
from functools import partial

import jax
import jax.numpy as jnp
from jax.experimental import pallas as pl
from jax.experimental.pallas import tpu as pltpu


def attention_pool_kernel(x_ref, pos0_ref, possp_ref,
                          wqkv0_ref, bqkv0_ref, wkv_ref, bkv_ref,
                          wc_ref, bc_ref, gcs_ref, gsc_ref,
                          out_ref, *, num_heads, s_valid):
    """One grid step: a block of BB batches, all heads fused.

    Layouts (channels always on the lane axis):
      x_ref      [BB, Sp, C]      spatial tokens, token-major, bf16 (Sp >= s_valid)
      pos0_ref   [1, C]  f32      positional embedding of the pooled token
      possp_ref  [Sp, C] bf16     positional embedding of the spatial tokens
      wqkv0_ref  [C, 3C] bf16     [wq|wk|wv]^T, q part pre-scaled by ch**-0.5
      bqkv0_ref  [1, 3C] f32
      wkv_ref    [C, 2C] bf16     [wk|wv]^T
      bkv_ref    [1, 2C] f32
      wc_ref     [C, Dp] bf16     c_proj weight^T, lane-padded
      bc_ref     [1, Dp] f32
      gcs_ref    [C, H]  f32      one-hot per-head reduce
      gsc_ref    [H, C]  f32      one-hot per-head broadcast
      out_ref    [1, BB, Dp] f32
    """
    BB, Sp, C = x_ref.shape
    H = num_heads
    f32 = jnp.float32
    bf16 = jnp.bfloat16

    # ---- mean pool over the valid tokens + positional embeddings -----------
    xb = x_ref[...]                                            # [BB, Sp, C] bf16
    mean = jnp.sum(xb.astype(f32), axis=1) * (1.0 / s_valid)   # [BB, C] f32 (pads are 0)
    x0 = (mean + pos0_ref[...]).astype(bf16)                   # [BB, C]  pooled token
    xsp = (xb + possp_ref[...]).reshape(BB * Sp, C)            # [BB*Sp, C] spatial tokens
    #                                  (layout-free: Sp is a multiple of 16)

    # ---- fused projections: pooled row -> q|k|v, spatial rows -> k|v -------
    qkv0 = jnp.dot(x0, wqkv0_ref[...],
                   preferred_element_type=f32) + bqkv0_ref[...]          # [BB, 3C]
    q0s, k0, v0 = qkv0[:, :C], qkv0[:, C:2 * C], qkv0[:, 2 * C:]         # [BB, C] each
    kvsp = jnp.dot(xsp, wkv_ref[...],
                   preferred_element_type=f32) + bkv_ref[...]            # [BB*Sp, 2C]
    ksp3 = kvsp[:, :C].reshape(BB, Sp, C)                                # [BB, Sp, C]
    vsp3 = kvsp[:, C:].reshape(BB, Sp, C)

    # ---- attention logits for the pooled query only (per-head one-hot dot) --
    l0 = jnp.dot(q0s * k0, gcs_ref[...], preferred_element_type=f32)     # [BB, H]
    lsp = jnp.dot((q0s[:, None, :] * ksp3).reshape(BB * Sp, C), gcs_ref[...],
                  preferred_element_type=f32).reshape(BB, Sp, H)         # [BB, Sp, H]
    if Sp != s_valid:  # mask padded key rows out of the softmax
        pad = jax.lax.broadcasted_iota(jnp.int32, (BB, Sp, H), 1) >= s_valid
        lsp = jnp.where(pad, jnp.float32(-1e30), lsp)

    # ---- softmax over the S + 1 keys, per (batch, head), f32 ---------------
    m = jnp.maximum(l0, jnp.max(lsp, axis=1))                            # [BB, H]
    e0 = jnp.exp(l0 - m)                                                 # [BB, H]
    esp = jnp.exp(lsp - m[:, None, :])                                   # [BB, Sp, H]
    inv = pl.reciprocal(e0 + jnp.sum(esp, axis=1), approx=True)          # [BB, H]

    # ---- weighted value sum (per-head broadcast), then normalize -----------
    # TODO(synk): at CLIP scale on v7x (64 MiB VMEM) chunk the Sp axis here
    # with an online-softmax accumulator so the [BB,Sp,C] f32 temporaries shrink.
    w0 = jnp.dot(e0, gsc_ref[...], preferred_element_type=f32)           # [BB, C]
    wsp = jnp.dot(esp.reshape(BB * Sp, H), gsc_ref[...],
                  preferred_element_type=f32).reshape(BB, Sp, C)         # [BB, Sp, C]
    a0 = w0 * v0 + jnp.sum(wsp * vsp3, axis=1)                           # [BB, C]
    a0 = a0 * jnp.dot(inv, gsc_ref[...], preferred_element_type=f32)     # [BB, C]

    # ---- c_proj; lane-dense [BB, Dout_pad] store ----------------------------
    out = jnp.dot(a0.astype(bf16), wc_ref[...],
                  preferred_element_type=f32) + bc_ref[...]
    out_ref[0] = out.astype(out_ref.dtype)


def _const_spec(shape):
    """Constant-index operand: whole array, single-buffered (its block never
    changes across the grid, so double-buffering would only waste VMEM)."""
    n = len(shape)
    idx = lambda i, _n=n: (0,) * _n
    try:
        return pl.BlockSpec(shape, idx, pipeline_mode=pl.Buffered(1))
    except Exception:  # older jax without pipeline_mode / Buffered
        return pl.BlockSpec(shape, idx)


def attention_pool_2d(x, pos, w_qkv, b_qkv, w_c, b_c, *, num_heads, block_b=None):
    """x: [B, C, H, W]; pos: [C, H*W+1]; w_qkv: [3C, C]; w_c: [Dout, C]."""
    B, C, Hs, Ws = x.shape
    S = Hs * Ws
    Dout = w_c.shape[0]
    ch = C // num_heads
    scale2 = 1.0 / math.sqrt(ch)   # product of the two ch**-0.25 scales
    f32 = jnp.float32
    bf16 = jnp.bfloat16

    # Grid with >= 2 steps when possible: the x-block DMA of step i+1 hides
    # under step i's matmuls, and v7x's two TensorCores both get work.
    # (At CLIP scale, also aim for block_b*S near a multiple of 256 on v6e/v7x.)
    if block_b is None:
        block_b = B
        for d in range(B // 2, 0, -1):
            if B % d == 0:
                block_b = d
                break
    assert B % block_b == 0

    # Pad S to the bf16 sublane pack (16) so in-kernel reshapes are layout-free;
    # pad Dout to a 128 multiple so the output store is lane-dense.
    S_pad = ((S + 15) // 16) * 16
    Dout_pad = ((Dout + 127) // 128) * 128

    # Token-major [B, S, C] bf16: channels on the lane axis for every matmul.
    # TODO(synk): if the producer can emit token-major bf16 activations
    # directly, drop this transpose/cast pre-pass (it is an extra HBM round
    # trip of x as a separate XLA op).
    x_t = x.reshape(B, C, S).transpose(0, 2, 1).astype(bf16)
    if S_pad != S:
        x_t = jnp.pad(x_t, ((0, 0), (0, S_pad - S), (0, 0)))

    pos0 = pos[:, 0].reshape(1, C).astype(f32)
    pos_sp = pos[:, 1:].T.astype(bf16)
    if S_pad != S:
        pos_sp = jnp.pad(pos_sp, ((0, S_pad - S), (0, 0)))

    # Fused, pre-transposed projection weights (bf16 MXU operands); the q*k
    # scale is folded into the q weights/bias (constant fold, free).
    w_q_t = w_qkv[0:C, :].T * scale2
    w_k_t = w_qkv[C:2 * C, :].T
    w_v_t = w_qkv[2 * C:3 * C, :].T
    w_qkv0_t = jnp.concatenate([w_q_t, w_k_t, w_v_t], axis=1).astype(bf16)  # [C, 3C]
    w_kv_t = jnp.concatenate([w_k_t, w_v_t], axis=1).astype(bf16)           # [C, 2C]
    b_q = b_qkv[0:C] * scale2
    b_k = b_qkv[C:2 * C]
    b_v = b_qkv[2 * C:3 * C]
    b_qkv0 = jnp.concatenate([b_q, b_k, b_v]).reshape(1, 3 * C).astype(f32)
    b_kv = jnp.concatenate([b_k, b_v]).reshape(1, 2 * C).astype(f32)

    w_c_t = jnp.pad(w_c.T.astype(f32),
                    ((0, 0), (0, Dout_pad - Dout))).astype(bf16)            # [C, Dp]
    b_c2 = jnp.pad(b_c.reshape(1, Dout).astype(f32),
                   ((0, 0), (0, Dout_pad - Dout)))                          # [1, Dp]

    # One-hot per-head reduce / broadcast matrices, built once (not per step).
    head_of = jnp.arange(C, dtype=jnp.int32) // ch
    g_cs = (head_of[:, None] == jnp.arange(num_heads)[None, :]).astype(f32)  # [C, H]
    g_sc = g_cs.T                                                            # [H, C]

    # Explicit VMEM budget: ~physical minus headroom, capped per generation.
    try:
        vmem_cap = int(pltpu.get_tpu_info().vmem_capacity_bytes)
    except Exception:
        vmem_cap = 64 << 20   # conservative (v7x physical)
    vmem_limit = max(32 << 20, min(vmem_cap - (8 << 20), 100 << 20))

    out3 = pl.pallas_call(
        partial(attention_pool_kernel, num_heads=num_heads, s_valid=S),
        out_shape=jax.ShapeDtypeStruct((B // block_b, block_b, Dout_pad), f32),
        grid_spec=pltpu.PrefetchScalarGridSpec(
            num_scalar_prefetch=0,
            grid=(B // block_b,),
            in_specs=[
                pl.BlockSpec((block_b, S_pad, C), lambda i: (i, 0, 0)),  # x (pipelined)
                _const_spec((1, C)),              # pos0
                _const_spec((S_pad, C)),          # pos_sp
                _const_spec((C, 3 * C)),          # [wq|wk|wv]^T (q pre-scaled)
                _const_spec((1, 3 * C)),          # [bq|bk|bv]
                _const_spec((C, 2 * C)),          # [wk|wv]^T
                _const_spec((1, 2 * C)),          # [bk|bv]
                _const_spec((C, Dout_pad)),       # wc^T (lane-padded)
                _const_spec((1, Dout_pad)),       # bc
                _const_spec((C, num_heads)),      # g_cs
                _const_spec((num_heads, C)),      # g_sc
            ],
            out_specs=pl.BlockSpec((1, block_b, Dout_pad), lambda i: (i, 0, 0)),
        ),
        compiler_params=pltpu.CompilerParams(
            dimension_semantics=("parallel",),
            vmem_limit_bytes=vmem_limit),
    )(x_t, pos0, pos_sp, w_qkv0_t, b_qkv0, w_kv_t, b_kv, w_c_t, b_c2, g_cs, g_sc)

    return out3.reshape(B, Dout_pad)[:, :Dout]                              # [B, Dout]


def ref_attention_pool_2d(x, pos, w_qkv, b_qkv, w_c, b_c, *, num_heads):
    """Pure-JAX reference mirroring the PyTorch module exactly."""
    B, C, H, W = x.shape
    S = H * W
    xr = x.reshape(B, C, S)
    xr = jnp.concatenate([xr.mean(axis=-1, keepdims=True), xr], axis=-1)
    xr = xr + pos[None, :, :]
    qkv = jnp.einsum('oc,bct->bot', w_qkv, xr) + b_qkv[None, :, None]
    ch = C // num_heads
    q, k, v = jnp.split(qkv, 3, axis=1)
    T = S + 1
    q = q.reshape(B * num_heads, ch, T)
    k = k.reshape(B * num_heads, ch, T)
    v = v.reshape(B * num_heads, ch, T)
    scale = 1.0 / math.sqrt(math.sqrt(ch))
    w = jnp.einsum('bct,bcs->bts', q * scale, k * scale)
    w = jax.nn.softmax(w, axis=-1)
    a = jnp.einsum('bts,bcs->bct', w, v).reshape(B, C, T)
    out = jnp.einsum('oc,bct->bot', w_c, a) + b_c[None, :, None]
    return out[:, :, 0]


if __name__ == "__main__":
    # Module config (small, consistent with AttentionPool2d.__init__):
    B = 2
    spacial_dim = 4          # H = W = 4  -> S = 16
    embed_dim = 32           # C
    num_heads_channels = 8   # -> num_heads = 4
    output_dim = 16

    num_heads = embed_dim // num_heads_channels
    S = spacial_dim * spacial_dim
    T = S + 1

    key = jax.random.PRNGKey(0)
    kx, kpos, kwq, kbq, kwc, kbc = jax.random.split(key, 6)

    x = jax.random.normal(kx, (B, embed_dim, spacial_dim, spacial_dim),
                          dtype=jnp.float32)
    # positional_embedding = randn(embed_dim, spacial_dim**2 + 1) / embed_dim**0.5
    pos = jax.random.normal(kpos, (embed_dim, T), jnp.float32) / embed_dim ** 0.5
    # qkv_proj: Conv1d(embed_dim, 3*embed_dim, 1) -> weight [3C, C], bias [3C]
    w_qkv = jax.random.normal(kwq, (3 * embed_dim, embed_dim), jnp.float32) * 0.05
    b_qkv = jax.random.normal(kbq, (3 * embed_dim,), jnp.float32) * 0.05
    # c_proj: Conv1d(embed_dim, output_dim, 1) -> weight [Dout, C], bias [Dout]
    w_c = jax.random.normal(kwc, (output_dim, embed_dim), jnp.float32) * 0.05
    b_c = jax.random.normal(kbc, (output_dim,), jnp.float32) * 0.05

    out = attention_pool_2d(x, pos, w_qkv, b_qkv, w_c, b_c, num_heads=num_heads)
    out = jax.block_until_ready(out)

    ref = ref_attention_pool_2d(x, pos, w_qkv, b_qkv, w_c, b_c,
                                num_heads=num_heads)

    assert out.shape == (B, output_dim), out.shape
    # Tolerance reflects the deliberate bf16 MXU operands and the EUP
    # approximate reciprocal in the softmax denominator.
    err = float(jnp.max(jnp.abs(out - ref)))
    assert jnp.allclose(out, ref, atol=2e-2, rtol=2e-2), err
    print("KERNEL_OK")
</pallas_src>

<mosaic_0001>
module attributes {stable_mosaic.version = 11 : i64} {
  func.func @attention_pool_kernel(%arg0: i32, %arg1: memref<1x16x32xbf16, #tpu.memory_space<vmem>>, %arg2: memref<1x32xf32, #tpu.memory_space<vmem>>, %arg3: memref<16x32xbf16, #tpu.memory_space<vmem>>, %arg4: memref<32x96xbf16, #tpu.memory_space<vmem>>, %arg5: memref<1x96xf32, #tpu.memory_space<vmem>>, %arg6: memref<32x64xbf16, #tpu.memory_space<vmem>>, %arg7: memref<1x64xf32, #tpu.memory_space<vmem>>, %arg8: memref<32x128xbf16, #tpu.memory_space<vmem>>, %arg9: memref<1x128xf32, #tpu.memory_space<vmem>>, %arg10: memref<32x4xf32, #tpu.memory_space<vmem>>, %arg11: memref<4x32xf32, #tpu.memory_space<vmem>>, %arg12: memref<1x1x128xf32, #tpu.memory_space<vmem>>) attributes {dimension_semantics = [#tpu.dimension_semantics<parallel>], iteration_bounds = array<i64: 2>, scalar_prefetch = 0 : i64, scratch_operands = 0 : i64, tpu.core_type = #tpu.core_type<tc>, window_params = [{transform_indices = @transform_0, window_bounds = array<i64: 1, 16, 32>}, {pipeline_mode = #tpu.pipeline_mode<synchronous>, transform_indices = @transform_1, window_bounds = array<i64: 1, 32>}, {pipeline_mode = #tpu.pipeline_mode<synchronous>, transform_indices = @transform_2, window_bounds = array<i64: 16, 32>}, {pipeline_mode = #tpu.pipeline_mode<synchronous>, transform_indices = @transform_3, window_bounds = array<i64: 32, 96>}, {pipeline_mode = #tpu.pipeline_mode<synchronous>, transform_indices = @transform_4, window_bounds = array<i64: 1, 96>}, {pipeline_mode = #tpu.pipeline_mode<synchronous>, transform_indices = @transform_5, window_bounds = array<i64: 32, 64>}, {pipeline_mode = #tpu.pipeline_mode<synchronous>, transform_indices = @transform_6, window_bounds = array<i64: 1, 64>}, {pipeline_mode = #tpu.pipeline_mode<synchronous>, transform_indices = @transform_7, window_bounds = array<i64: 32, 128>}, {pipeline_mode = #tpu.pipeline_mode<synchronous>, transform_indices = @transform_8, window_bounds = array<i64: 1, 128>}, {pipeline_mode = #tpu.pipeline_mode<synchronous>, transform_indices = @transform_9, window_bounds = array<i64: 32, 4>}, {pipeline_mode = #tpu.pipeline_mode<synchronous>, transform_indices = @transform_10, window_bounds = array<i64: 4, 32>}, {transform_indices = @transform_11, window_bounds = array<i64: 1, 1, 128>}]} {
    %c0 = arith.constant 0 : index
    %c0_0 = arith.constant 0 : index
    %c0_1 = arith.constant 0 : index
    %0 = vector.load %arg1[%c0, %c0_0, %c0_1] : memref<1x16x32xbf16, #tpu.memory_space<vmem>>, vector<1x16x32xbf16>
    %1 = arith.extf %0 : vector<1x16x32xbf16> to vector<1x16x32xf32>
    %cst = arith.constant dense<0.000000e+00> : vector<1x32xf32>
    %2 = vector.multi_reduction <add>, %1, %cst [1] : vector<1x16x32xf32> to vector<1x32xf32>
    %cst_2 = arith.constant 6.250000e-02 : f32
    %3 = vector.broadcast %cst_2 : f32 to vector<1x32xf32>
    %4 = arith.mulf %2, %3 : vector<1x32xf32>
    %c0_3 = arith.constant 0 : index
    %c0_4 = arith.constant 0 : index
    %5 = vector.load %arg2[%c0_3, %c0_4] : memref<1x32xf32, #tpu.memory_space<vmem>>, vector<1x32xf32>
    %6 = arith.addf %4, %5 : vector<1x32xf32>
    %7 = arith.truncf %6 : vector<1x32xf32> to vector<1x32xbf16>
    %c0_5 = arith.constant 0 : index
    %c0_6 = arith.constant 0 : index
    %8 = vector.load %arg3[%c0_5, %c0_6] : memref<16x32xbf16, #tpu.memory_space<vmem>>, vector<16x32xbf16>
    %9 = vector.shape_cast %8 : vector<16x32xbf16> to vector<1x16x32xbf16>
    %10 = arith.addf %0, %9 : vector<1x16x32xbf16>
    %11 = vector.shape_cast %10 : vector<1x16x32xbf16> to vector<16x32xbf16>
    %c0_7 = arith.constant 0 : index
    %c0_8 = arith.constant 0 : index
    %12 = vector.load %arg4[%c0_7, %c0_8] : memref<32x96xbf16, #tpu.memory_space<vmem>>, vector<32x96xbf16>
    %cst_9 = arith.constant dense<0.000000e+00> : vector<1x96xf32>
    %13 = tpu.matmul %7, %12, %cst_9 {dimension_numbers = #tpu.dot_dimension_numbers<[1], [0], [0], [1], [0, 0, 1, 1], [], []>} : vector<1x32xbf16>, vector<32x96xbf16>, vector<1x96xf32> -> vector<1x96xf32>
    %c0_10 = arith.constant 0 : index
    %c0_11 = arith.constant 0 : index
    %14 = vector.load %arg5[%c0_10, %c0_11] : memref<1x96xf32, #tpu.memory_space<vmem>>, vector<1x96xf32>
    %15 = arith.addf %13, %14 : vector<1x96xf32>
    %16 = vector.extract_strided_slice %15 {offsets = [0, 0], sizes = [1, 32], strides = [1, 1]} : vector<1x96xf32> to vector<1x32xf32>
    %17 = vector.extract_strided_slice %15 {offsets = [0, 32], sizes = [1, 32], strides = [1, 1]} : vector<1x96xf32> to vector<1x32xf32>
    %18 = vector.extract_strided_slice %15 {offsets = [0, 64], sizes = [1, 32], strides = [1, 1]} : vector<1x96xf32> to vector<1x32xf32>
    %c0_12 = arith.constant 0 : index
    %c0_13 = arith.constant 0 : index
    %19 = vector.load %arg6[%c0_12, %c0_13] : memref<32x64xbf16, #tpu.memory_space<vmem>>, vector<32x64xbf16>
    %cst_14 = arith.constant dense<0.000000e+00> : vector<16x64xf32>
    %20 = tpu.matmul %11, %19, %cst_14 {dimension_numbers = #tpu.dot_dimension_numbers<[1], [0], [0], [1], [0, 0, 1, 1], [], []>} : vector<16x32xbf16>, vector<32x64xbf16>, vector<16x64xf32> -> vector<16x64xf32>
    %c0_15 = arith.constant 0 : index
    %c0_16 = arith.constant 0 : index
    %21 = vector.load %arg7[%c0_15, %c0_16] : memref<1x64xf32, #tpu.memory_space<vmem>>, vector<1x64xf32>
    %22 = vector.broadcast %21 : vector<1x64xf32> to vector<16x64xf32>
    %23 = arith.addf %20, %22 : vector<16x64xf32>
    %24 = vector.extract_strided_slice %23 {offsets = [0, 0], sizes = [16, 32], strides = [1, 1]} : vector<16x64xf32> to vector<16x32xf32>
    %25 = vector.shape_cast %24 : vector<16x32xf32> to vector<1x16x32xf32>
    %26 = vector.extract_strided_slice %23 {offsets = [0, 32], sizes = [16, 32], strides = [1, 1]} : vector<16x64xf32> to vector<16x32xf32>
    %27 = vector.shape_cast %26 : vector<16x32xf32> to vector<1x16x32xf32>
    %28 = arith.mulf %16, %17 : vector<1x32xf32>
    %c0_17 = arith.constant 0 : index
    %c0_18 = arith.constant 0 : index
    %29 = vector.load %arg10[%c0_17, %c0_18] : memref<32x4xf32, #tpu.memory_space<vmem>>, vector<32x4xf32>
    %cst_19 = arith.constant dense<0.000000e+00> : vector<1x4xf32>
    %30 = tpu.matmul %28, %29, %cst_19 {dimension_numbers = #tpu.dot_dimension_numbers<[1], [0], [0], [1], [0, 0, 1, 1], [], []>} : vector<1x32xf32>, vector<32x4xf32>, vector<1x4xf32> -> vector<1x4xf32>
    %31 = vector.shape_cast %16 : vector<1x32xf32> to vector<1x1x32xf32>
    %32 = vector.broadcast %31 : vector<1x1x32xf32> to vector<1x16x32xf32>
    %33 = arith.mulf %32, %25 : vector<1x16x32xf32>
    %34 = vector.shape_cast %33 : vector<1x16x32xf32> to vector<16x32xf32>
    %c0_20 = arith.constant 0 : index
    %c0_21 = arith.constant 0 : index
    %35 = vector.load %arg10[%c0_20, %c0_21] : memref<32x4xf32, #tpu.memory_space<vmem>>, vector<32x4xf32>
    %cst_22 = arith.constant dense<0.000000e+00> : vector<16x4xf32>
    %36 = tpu.matmul %34, %35, %cst_22 {dimension_numbers = #tpu.dot_dimension_numbers<[1], [0], [0], [1], [0, 0, 1, 1], [], []>} : vector<16x32xf32>, vector<32x4xf32>, vector<16x4xf32> -> vector<16x4xf32>
    %37 = vector.shape_cast %36 : vector<16x4xf32> to vector<1x16x4xf32>
    %cst_23 = arith.constant dense<0xFF800000> : vector<1x4xf32>
    %38 = vector.multi_reduction <maximumf>, %37, %cst_23 [1] : vector<1x16x4xf32> to vector<1x4xf32>
    %39 = arith.maximumf %30, %38 : vector<1x4xf32>
    %40 = arith.subf %30, %39 : vector<1x4xf32>
    %41 = math.exp %40 : vector<1x4xf32>
    %42 = vector.shape_cast %39 : vector<1x4xf32> to vector<1x1x4xf32>
    %43 = vector.broadcast %42 : vector<1x1x4xf32> to vector<1x16x4xf32>
    %44 = arith.subf %37, %43 : vector<1x16x4xf32>
    %45 = math.exp %44 : vector<1x16x4xf32>
    %cst_24 = arith.constant dense<0.000000e+00> : vector<1x4xf32>
    %46 = vector.multi_reduction <add>, %45, %cst_24 [1] : vector<1x16x4xf32> to vector<1x4xf32>
    %47 = arith.addf %41, %46 : vector<1x4xf32>
    %48 = tpu.reciprocal %47 {approx = true} : vector<1x4xf32> -> vector<1x4xf32>
    %c0_25 = arith.constant 0 : index
    %c0_26 = arith.constant 0 : index
    %49 = vector.load %arg11[%c0_25, %c0_26] : memref<4x32xf32, #tpu.memory_space<vmem>>, vector<4x32xf32>
    %cst_27 = arith.constant dense<0.000000e+00> : vector<1x32xf32>
    %50 = tpu.matmul %41, %49, %cst_27 {dimension_numbers = #tpu.dot_dimension_numbers<[1], [0], [0], [1], [0, 0, 1, 1], [], []>} : vector<1x4xf32>, vector<4x32xf32>, vector<1x32xf32> -> vector<1x32xf32>
    %51 = vector.shape_cast %45 : vector<1x16x4xf32> to vector<16x4xf32>
    %c0_28 = arith.constant 0 : index
    %c0_29 = arith.constant 0 : index
    %52 = vector.load %arg11[%c0_28, %c0_29] : memref<4x32xf32, #tpu.memory_space<vmem>>, vector<4x32xf32>
    %cst_30 = arith.constant dense<0.000000e+00> : vector<16x32xf32>
    %53 = tpu.matmul %51, %52, %cst_30 {dimension_numbers = #tpu.dot_dimension_numbers<[1], [0], [0], [1], [0, 0, 1, 1], [], []>} : vector<16x4xf32>, vector<4x32xf32>, vector<16x32xf32> -> vector<16x32xf32>
    %54 = vector.shape_cast %53 : vector<16x32xf32> to vector<1x16x32xf32>
    %55 = arith.mulf %50, %18 : vector<1x32xf32>
    %56 = arith.mulf %54, %27 : vector<1x16x32xf32>
    %cst_31 = arith.constant dense<0.000000e+00> : vector<1x32xf32>
    %57 = vector.multi_reduction <add>, %56, %cst_31 [1] : vector<1x16x32xf32> to vector<1x32xf32>
    %58 = arith.addf %55, %57 : vector<1x32xf32>
    %c0_32 = arith.constant 0 : index
    %c0_33 = arith.constant 0 : index
    %59 = vector.load %arg11[%c0_32, %c0_33] : memref<4x32xf32, #tpu.memory_space<vmem>>, vector<4x32xf32>
    %cst_34 = arith.constant dense<0.000000e+00> : vector<1x32xf32>
    %60 = tpu.matmul %48, %59, %cst_34 {dimension_numbers = #tpu.dot_dimension_numbers<[1], [0], [0], [1], [0, 0, 1, 1], [], []>} : vector<1x4xf32>, vector<4x32xf32>, vector<1x32xf32> -> vector<1x32xf32>
    %61 = arith.mulf %58, %60 : vector<1x32xf32>
    %62 = arith.truncf %61 : vector<1x32xf32> to vector<1x32xbf16>
    %c0_35 = arith.constant 0 : index
    %c0_36 = arith.constant 0 : index
    %63 = vector.load %arg8[%c0_35, %c0_36] : memref<32x128xbf16, #tpu.memory_space<vmem>>, vector<32x128xbf16>
    %cst_37 = arith.constant dense<0.000000e+00> : vector<1x128xf32>
    %64 = tpu.matmul %62, %63, %cst_37 {dimension_numbers = #tpu.dot_dimension_numbers<[1], [0], [0], [1], [0, 0, 1, 1], [], []>} : vector<1x32xbf16>, vector<32x128xbf16>, vector<1x128xf32> -> vector<1x128xf32>
    %c0_38 = arith.constant 0 : index
    %c0_39 = arith.constant 0 : index
    %65 = vector.load %arg9[%c0_38, %c0_39] : memref<1x128xf32, #tpu.memory_space<vmem>>, vector<1x128xf32>
    %66 = arith.addf %64, %65 : vector<1x128xf32>
    %c0_40 = arith.constant 0 : index
    %c0_41 = arith.constant 0 : index
    %c0_42 = arith.constant 0 : index
    %67 = vector.load %arg12[%c0_40, %c0_41, %c0_42] : memref<1x1x128xf32, #tpu.memory_space<vmem>>, vector<1x1x128xf32>
    %68 = vector.shape_cast %67 : vector<1x1x128xf32> to vector<1x128xf32>
    %69 = vector.shape_cast %66 : vector<1x128xf32> to vector<1x1x128xf32>
    tpu.vector_store %arg12[%c0_40, %c0_41, %c0_42], %69 {strides = array<i32>} : memref<1x1x128xf32, #tpu.memory_space<vmem>>, vector<1x1x128xf32>,
    return
  }
  func.func @transform_0(%arg0: i32) -> (i32, i32, i32) {
    %c0_i32 = arith.constant 0 : i32
    %c0_i32_0 = arith.constant 0 : i32
    %c0_i32_1 = arith.constant 0 : i32
    return %arg0, %c0_i32, %c0_i32_0 : i32, i32, i32
  }
  func.func @transform_1(%arg0: i32) -> (i32, i32) {
    %c0_i32 = arith.constant 0 : i32
    %c0_i32_0 = arith.constant 0 : i32
    %c0_i32_1 = arith.constant 0 : i32
    return %c0_i32, %c0_i32_0 : i32, i32
  }
  func.func @transform_2(%arg0: i32) -> (i32, i32) {
    %c0_i32 = arith.constant 0 : i32
    %c0_i32_0 = arith.constant 0 : i32
    %c0_i32_1 = arith.constant 0 : i32
    return %c0_i32, %c0_i32_0 : i32, i32
  }
  func.func @transform_3(%arg0: i32) -> (i32, i32) {
    %c0_i32 = arith.constant 0 : i32
    %c0_i32_0 = arith.constant 0 : i32
    %c0_i32_1 = arith.constant 0 : i32
    return %c0_i32, %c0_i32_0 : i32, i32
  }
  func.func @transform_4(%arg0: i32) -> (i32, i32) {
    %c0_i32 = arith.constant 0 : i32
    %c0_i32_0 = arith.constant 0 : i32
    %c0_i32_1 = arith.constant 0 : i32
    return %c0_i32, %c0_i32_0 : i32, i32
  }
  func.func @transform_5(%arg0: i32) -> (i32, i32) {
    %c0_i32 = arith.constant 0 : i32
    %c0_i32_0 = arith.constant 0 : i32
    %c0_i32_1 = arith.constant 0 : i32
    return %c0_i32, %c0_i32_0 : i32, i32
  }
  func.func @transform_6(%arg0: i32) -> (i32, i32) {
    %c0_i32 = arith.constant 0 : i32
    %c0_i32_0 = arith.constant 0 : i32
    %c0_i32_1 = arith.constant 0 : i32
    return %c0_i32, %c0_i32_0 : i32, i32
  }
  func.func @transform_7(%arg0: i32) -> (i32, i32) {
    %c0_i32 = arith.constant 0 : i32
    %c0_i32_0 = arith.constant 0 : i32
    %c0_i32_1 = arith.constant 0 : i32
    return %c0_i32, %c0_i32_0 : i32, i32
  }
  func.func @transform_8(%arg0: i32) -> (i32, i32) {
    %c0_i32 = arith.constant 0 : i32
    %c0_i32_0 = arith.constant 0 : i32
    %c0_i32_1 = arith.constant 0 : i32
    return %c0_i32, %c0_i32_0 : i32, i32
  }
  func.func @transform_9(%arg0: i32) -> (i32, i32) {
    %c0_i32 = arith.constant 0 : i32
    %c0_i32_0 = arith.constant 0 : i32
    %c0_i32_1 = arith.constant 0 : i32
    return %c0_i32, %c0_i32_0 : i32, i32
  }
  func.func @transform_10(%arg0: i32) -> (i32, i32) {
    %c0_i32 = arith.constant 0 : i32
    %c0_i32_0 = arith.constant 0 : i32
    %c0_i32_1 = arith.constant 0 : i32
    return %c0_i32, %c0_i32_0 : i32, i32
  }
  func.func @transform_11(%arg0: i32) -> (i32, i32, i32) {
    %c0_i32 = arith.constant 0 : i32
    %c0_i32_0 = arith.constant 0 : i32
    %c0_i32_1 = arith.constant 0 : i32
    return %arg0, %c0_i32, %c0_i32_0 : i32, i32, i32
  }
}

</mosaic_0001>

<llo_original>
// kernel: tpu_custom_call.1
$region0: #{tpu_custom_call.1}
  #allocation0 [shape = 'u32[]', space=smem, size = 0x4, offset = 0x4, fixed_abs, tag = 'smem constant byte address 0x4 - core index']
  #allocation1 [shape = 'u32[144,128]{1,0:T(1,128)}', space=vmem, size = 0x12000, scoped, tag = 'internal scratch']
  %s0 = inlined_call_operand.vmem [shape: bf16[2,16,32], index: 0, kind: input, shape index: {}]
  %s1 = inlined_call_operand.vmem [shape: f32[1,32], index: 1, kind: input, shape index: {}]
  %s2 = inlined_call_operand.hbm [shape: bf16[16,32], index: 2, kind: input, shape index: {}]
  %s3 = inlined_call_operand.vmem [shape: bf16[32,96], index: 3, kind: input, shape index: {}]
  %s4 = inlined_call_operand.vmem [shape: f32[1,96], index: 4, kind: input, shape index: {}]
  %s5 = inlined_call_operand.vmem [shape: bf16[32,64], index: 5, kind: input, shape index: {}]
  %s6 = inlined_call_operand.hbm [shape: f32[1,64], index: 6, kind: input, shape index: {}]
  %s7 = inlined_call_operand.hbm [shape: bf16[32,128], index: 7, kind: input, shape index: {}]
  %s8 = inlined_call_operand.vmem [shape: f32[1,128], index: 8, kind: input, shape index: {}]
  %s9 = inlined_call_operand.vmem [shape: f32[32,4], index: 9, kind: input, shape index: {}]
  %s10 = inlined_call_operand.vmem [shape: f32[4,32], index: 10, kind: input, shape index: {}]
  %s11 = inlined_call_operand.hbm [shape: f32[2,1,128], index: 11, kind: output, shape index: {}]
  %s12 = sld [smem:[#allocation0]]
  $region89: #{tpu_custom_call.1} parent=0
    _
  %s14 = ssub.s32 1, %s12
  %s15 = scalar_select 0, %s14, %s12
  $region1: #{tpu_custom_call.1} parent=0
    #allocation2 [shape = 'u8[4096]{0}', space=vmem, size = 0x1000, scoped, tag = 'input window, operand 2, single buffered']
    #allocation3 [shape = 's32[2]{0}', space=sflag, size = 0x8, scoped, tag = 'scoped memory for tpu_custom_call.1']
    #allocation4 [shape = 's32[2]{0}', space=sflag, size = 0x8, scoped, tag = 'scoped memory for tpu_custom_call.1']
    #allocation5 [shape = 'u8[512]{0}', space=vmem, size = 0x400, scoped, tag = 'input window, operand 6, single buffered']
    #allocation6 [shape = 's32[1]{0}', space=sflag, size = 0x4, scoped, tag = 'scoped memory for tpu_custom_call.1']
    #allocation7 [shape = 'u8[8192]{0}', space=vmem, size = 0x2000, scoped, tag = 'input window, operand 7, single buffered']
    #allocation8 [shape = 'u8[1024]{0}', space=vmem, size = 0x400, scoped, tag = 'output window, operand 0']
    %16 = vsyncpa [#allocation3], 0
    %17 = vsyncpa [#allocation6], 0
    %18 = vsyncpa [#allocation4], 0
    %s19 = scalar_lea.sflag [#allocation4], 1
    %20 = vsyncpa %s19, 0
    loop: start=0, step=1, limit=4
    $region2: #{tpu_custom_call.1} parent=1 // loop_pre_header
      _
    $region3: #{tpu_custom_call.1} parent=1 // loop_header
      %s22 = sphi 0, %s26
      %p23 = scmp.ge.s32.totalorder %s22, 4
      %s32 = sphi 0, %s34
      %s35 = sphi 0, %s32
      %s36 = sphi 0, %s35
      %s52 = sphi 0, %s36
      %s56 = sphi 0, %s56
      %s58 = sphi 0, %s56
      %s59 = sphi 0, %s58
      %s73 = sphi 0, %s59
      %s77 = sphi 0, %s77
      %s79 = sphi 0, %s77
      %s80 = sphi 0, %s79
      %s94 = sphi 0, %s80
      %s98 = sphi 0, %s98
      %s100 = sphi 0, %s98
      %s101 = sphi 0, %s100
      %s115 = sphi 0, %s101
      %s119 = sphi 0, %s119
      %s121 = sphi 0, %s119
      %s122 = sphi 0, %s121
      %s136 = sphi 0, %s122
      %s140 = sphi 0, %s140
      %s142 = sphi 0, %s140
      %s143 = sphi 0, %s142
      %s157 = sphi 0, %s143
      %s161 = sphi 0, %s161
      %s163 = sphi 0, %s161
      %s164 = sphi 0, %s163
      %s178 = sphi 0, %s164
      %s182 = sphi 0, %s182
      %s184 = sphi 0, %s182
      %s185 = sphi 0, %s184
      %s199 = sphi 0, %s185
      %s203 = sphi 0, %s203
      %s205 = sphi 0, %s203
      %s206 = sphi 0, %s205
      %s220 = sphi 0, %s206
      %s224 = sphi 0, %s224
      %s226 = sphi 0, %s224
      %s227 = sphi 0, %s226
      %s241 = sphi 0, %s227
      %s245 = sphi 0, %s245
      %s247 = sphi 0, %s245
      %s248 = sphi 0, %s247
      %s262 = sphi 0, %s248
      %s268 = sphi 0, %s270
      %s271 = sphi 0, %s268
      %s272 = sphi 0, %s271
      %s288 = sphi 0, %s272
    $region4: #{tpu_custom_call.1} parent=1 // loop_header_branch
      %25 = sbr.rel (%p23) target = $region8
    $region5: #{tpu_custom_call.1} parent=1 // loop_body
      %s27 = ssub.s32 %s22, 1
      %s28 = ssub.s32 %s22, 2
      %s29 = sadd.s32 %s22, 1
      %s30 = ssub.s32 %s22, %s29
      %p31 = scmp.eq.s32.totalorder %s30, 0
      %s33 = sadd.s32 %s32, 1
      %s34 = scalar_select %p31, %s32, %s33
      %p37 = pneg %p31
      %p38 = scmp.eq.s32.totalorder %s22, 1
      %p39 = por %p37, %p38
      %p40 = scmp.ne.s32.totalorder %s32, %s35
      %p41 = scmp.eq.s32.totalorder %s22, 0
      %p42 = por %p40, %p41
      %p43 = scmp.ne.s32.totalorder %s32, %s35
      %p44 = scmp.eq.s32.totalorder %s27, 1
      %p45 = por %p43, %p44
      %p46 = scmp.ne.s32.totalorder %s35, %s36
      %p47 = scmp.eq.s32.totalorder %s27, 0
      %p48 = por %p46, %p47
      %p49 = scmp.ne.s32.totalorder %s35, %s36
      %p50 = scmp.eq.s32.totalorder %s28, 1
      %p51 = por %p49, %p50
      %p53 = scmp.ne.s32.totalorder %s36, %s52
      %p54 = scmp.eq.s32.totalorder %s28, 0
      %p55 = por %p53, %p54
      %s57 = sadd.s32 %s56, 1
      %p60 = scmp.eq.s32.totalorder %s22, 1
      %p61 = scmp.ne.s32.totalorder %s56, %s58
      %p62 = scmp.eq.s32.totalorder %s22, 0
      %p63 = por %p61, %p62
      %p64 = scmp.ne.s32.totalorder %s56, %s58
      %p65 = scmp.eq.s32.totalorder %s27, 1
      %p66 = por %p64, %p65
      %p67 = scmp.ne.s32.totalorder %s58, %s59
      %p68 = scmp.eq.s32.totalorder %s27, 0
      %p69 = por %p67, %p68
      %p70 = scmp.ne.s32.totalorder %s58, %s59
      %p71 = scmp.eq.s32.totalorder %s28, 1
      %p72 = por %p70, %p71
      %p74 = scmp.ne.s32.totalorder %s59, %s73
      %p75 = scmp.eq.s32.totalorder %s28, 0
      %p76 = por %p74, %p75
      %s78 = sadd.s32 %s77, 1
      %p81 = scmp.eq.s32.totalorder %s22, 1
      %p82 = scmp.ne.s32.totalorder %s77, %s79
      %p83 = scmp.eq.s32.totalorder %s22, 0
      %p84 = por %p82, %p83
      %p85 = scmp.ne.s32.totalorder %s77, %s79
      %p86 = scmp.eq.s32.totalorder %s27, 1
      %p87 = por %p85, %p86
      %p88 = scmp.ne.s32.totalorder %s79, %s80
      %p89 = scmp.eq.s32.totalorder %s27, 0
      %p90 = por %p88, %p89
      %p91 = scmp.ne.s32.totalorder %s79, %s80
      %p92 = scmp.eq.s32.totalorder %s28, 1
      %p93 = por %p91, %p92
      %p95 = scmp.ne.s32.totalorder %s80, %s94
      %p96 = scmp.eq.s32.totalorder %s28, 0
      %p97 = por %p95, %p96
      %s99 = sadd.s32 %s98, 1
      %p102 = scmp.eq.s32.totalorder %s22, 1
      %p103 = scmp.ne.s32.totalorder %s98, %s100
      %p104 = scmp.eq.s32.totalorder %s22, 0
      %p105 = por %p103, %p104
      %p106 = scmp.ne.s32.totalorder %s98, %s100
      %p107 = scmp.eq.s32.totalorder %s27, 1
      %p108 = por %p106, %p107
      %p109 = scmp.ne.s32.totalorder %s100, %s101
      %p110 = scmp.eq.s32.totalorder %s27, 0
      %p111 = por %p109, %p110
      %p112 = scmp.ne.s32.totalorder %s100, %s101
      %p113 = scmp.eq.s32.totalorder %s28, 1
      %p114 = por %p112, %p113
      %p116 = scmp.ne.s32.totalorder %s101, %s115
      %p117 = scmp.eq.s32.totalorder %s28, 0
      %p118 = por %p116, %p117
      %s120 = sadd.s32 %s119, 1
      %p123 = scmp.eq.s32.totalorder %s22, 1
      %p124 = scmp.ne.s32.totalorder %s119, %s121
      %p125 = scmp.eq.s32.totalorder %s22, 0
      %p126 = por %p124, %p125
      %p127 = scmp.ne.s32.totalorder %s119, %s121
      %p128 = scmp.eq.s32.totalorder %s27, 1
      %p129 = por %p127, %p128
      %p130 = scmp.ne.s32.totalorder %s121, %s122
      %p131 = scmp.eq.s32.totalorder %s27, 0
      %p132 = por %p130, %p131
      %p133 = scmp.ne.s32.totalorder %s121, %s122
      %p134 = scmp.eq.s32.totalorder %s28, 1
      %p135 = por %p133, %p134
      %p137 = scmp.ne.s32.totalorder %s122, %s136
      %p138 = scmp.eq.s32.totalorder %s28, 0
      %p139 = por %p137, %p138
      %s141 = sadd.s32 %s140, 1
      %p144 = scmp.eq.s32.totalorder %s22, 1
      %p145 = scmp.ne.s32.totalorder %s140, %s142
      %p146 = scmp.eq.s32.totalorder %s22, 0
      %p147 = por %p145, %p146
      %p148 = scmp.ne.s32.totalorder %s140, %s142
      %p149 = scmp.eq.s32.totalorder %s27, 1
      %p150 = por %p148, %p149
      %p151 = scmp.ne.s32.totalorder %s142, %s143
      %p152 = scmp.eq.s32.totalorder %s27, 0
      %p153 = por %p151, %p152
      %p154 = scmp.ne.s32.totalorder %s142, %s143
      %p155 = scmp.eq.s32.totalorder %s28, 1
      %p156 = por %p154, %p155
      %p158 = scmp.ne.s32.totalorder %s143, %s157
      %p159 = scmp.eq.s32.totalorder %s28, 0
      %p160 = por %p158, %p159
      %s162 = sadd.s32 %s161, 1
      %p165 = scmp.eq.s32.totalorder %s22, 1
      %p166 = scmp.ne.s32.totalorder %s161, %s163
      %p167 = scmp.eq.s32.totalorder %s22, 0
      %p168 = por %p166, %p167
      %p169 = scmp.ne.s32.totalorder %s161, %s163
      %p170 = scmp.eq.s32.totalorder %s27, 1
      %p171 = por %p169, %p170
      %p172 = scmp.ne.s32.totalorder %s163, %s164
      %p173 = scmp.eq.s32.totalorder %s27, 0
      %p174 = por %p172, %p173
      %p175 = scmp.ne.s32.totalorder %s163, %s164
      %p176 = scmp.eq.s32.totalorder %s28, 1
      %p177 = por %p175, %p176
      %p179 = scmp.ne.s32.totalorder %s164, %s178
      %p180 = scmp.eq.s32.totalorder %s28, 0
      %p181 = por %p179, %p180
      %s183 = sadd.s32 %s182, 1
      %p186 = scmp.eq.s32.totalorder %s22, 1
      %p187 = scmp.ne.s32.totalorder %s182, %s184
      %p188 = scmp.eq.s32.totalorder %s22, 0
      %p189 = por %p187, %p188
      %p190 = scmp.ne.s32.totalorder %s182, %s184
      %p191 = scmp.eq.s32.totalorder %s27, 1
      %p192 = por %p190, %p191
      %p193 = scmp.ne.s32.totalorder %s184, %s185
      %p194 = scmp.eq.s32.totalorder %s27, 0
      %p195 = por %p193, %p194
      %p196 = scmp.ne.s32.totalorder %s184, %s185
      %p197 = scmp.eq.s32.totalorder %s28, 1
      %p198 = por %p196, %p197
      %p200 = scmp.ne.s32.totalorder %s185, %s199
      %p201 = scmp.eq.s32.totalorder %s28, 0
      %p202 = por %p200, %p201
      %s204 = sadd.s32 %s203, 1
      %p207 = scmp.eq.s32.totalorder %s22, 1
      %p208 = scmp.ne.s32.totalorder %s203, %s205
      %p209 = scmp.eq.s32.totalorder %s22, 0
      %p210 = por %p208, %p209
      %p211 = scmp.ne.s32.totalorder %s203, %s205
      %p212 = scmp.eq.s32.totalorder %s27, 1
      %p213 = por %p211, %p212
      %p214 = scmp.ne.s32.totalorder %s205, %s206
      %p215 = scmp.eq.s32.totalorder %s27, 0
      %p216 = por %p214, %p215
      %p217 = scmp.ne.s32.totalorder %s205, %s206
      %p218 = scmp.eq.s32.totalorder %s28, 1
      %p219 = por %p217, %p218
      %p221 = scmp.ne.s32.totalorder %s206, %s220
      %p222 = scmp.eq.s32.totalorder %s28, 0
      %p223 = por %p221, %p222
      %s225 = sadd.s32 %s224, 1
      %p228 = scmp.eq.s32.totalorder %s22, 1
      %p229 = scmp.ne.s32.totalorder %s224, %s226
      %p230 = scmp.eq.s32.totalorder %s22, 0
      %p231 = por %p229, %p230
      %p232 = scmp.ne.s32.totalorder %s224, %s226
      %p233 = scmp.eq.s32.totalorder %s27, 1
      %p234 = por %p232, %p233
      %p235 = scmp.ne.s32.totalorder %s226, %s227
      %p236 = scmp.eq.s32.totalorder %s27, 0
      %p237 = por %p235, %p236
      %p238 = scmp.ne.s32.totalorder %s226, %s227
      %p239 = scmp.eq.s32.totalorder %s28, 1
      %p240 = por %p238, %p239
      %p242 = scmp.ne.s32.totalorder %s227, %s241
      %p243 = scmp.eq.s32.totalorder %s28, 0
      %p244 = por %p242, %p243
      %s246 = sadd.s32 %s245, 1
      %p249 = scmp.eq.s32.totalorder %s22, 1
      %p250 = scmp.ne.s32.totalorder %s245, %s247
      %p251 = scmp.eq.s32.totalorder %s22, 0
      %p252 = por %p250, %p251
      %p253 = scmp.ne.s32.totalorder %s245, %s247
      %p254 = scmp.eq.s32.totalorder %s27, 1
      %p255 = por %p253, %p254
      %p256 = scmp.ne.s32.totalorder %s247, %s248
      %p257 = scmp.eq.s32.totalorder %s27, 0
      %p258 = por %p256, %p257
      %p259 = scmp.ne.s32.totalorder %s247, %s248
      %p260 = scmp.eq.s32.totalorder %s28, 1
      %p261 = por %p259, %p260
      %p263 = scmp.ne.s32.totalorder %s248, %s262
      %p264 = scmp.eq.s32.totalorder %s28, 0
      %p265 = por %p263, %p264
      %s266 = ssub.s32 %s22, %s29
      %p267 = scmp.eq.s32.totalorder %s266, 0
      %s269 = sadd.s32 %s268, 1
      %s270 = scalar_select %p267, %s268, %s269
      %p273 = pneg %p267
      %p274 = scmp.eq.s32.totalorder %s22, 1
      %p275 = por %p273, %p274
      %p276 = scmp.ne.s32.totalorder %s268, %s271
      %p277 = scmp.eq.s32.totalorder %s22, 0
      %p278 = por %p276, %p277
      %p279 = scmp.ne.s32.totalorder %s268, %s271
      %p280 = scmp.eq.s32.totalorder %s27, 1
      %p281 = por %p279, %p280
      %p282 = scmp.ne.s32.totalorder %s271, %s272
      %p283 = scmp.eq.s32.totalorder %s27, 0
      %p284 = por %p282, %p283
      %p285 = scmp.ne.s32.totalorder %s271, %s272
      %p286 = scmp.eq.s32.totalorder %s28, 1
      %p287 = por %p285, %p286
      %p289 = scmp.ne.s32.totalorder %s272, %s288
      %p290 = scmp.eq.s32.totalorder %s28, 0
      %p291 = por %p289, %p290
      %p292 = scmp.le.s32.totalorder 1, %s22
      %p293 = scmp.lt.s32.totalorder %s22, 3
      %p294 = pnand %p292, %p293
      %p295 = pneg %p294
      // Predicated region
      $region9: #{tpu_custom_call.1} parent=5 // pred_check
        _
      $region10: #{tpu_custom_call.1} parent=5 // pred_check_branch
        %297 = sbr.rel (%p294) target = $region12
      $region11: #{tpu_custom_call.1} parent=5 // pred_region
        %s298 = ssub.s32 %s22, 1
        // Predicated region
        $region13: #{tpu_custom_call.1} parent=11 // pred_check
          %p299 = pneg %p69
        $region14: #{tpu_custom_call.1} parent=11 // pred_check_branch
          %301 = sbr.rel (%p299) target = $region16
        $region15: #{tpu_custom_call.1} parent=11 // pred_region
          _
        $region16: #{tpu_custom_call.1} parent=11 // pred_fallthru
          _
        // Predicated region
        $region17: #{tpu_custom_call.1} parent=11 // pred_check
          %p302 = pneg %p90
        $region18: #{tpu_custom_call.1} parent=11 // pred_check_branch
          %304 = sbr.rel (%p302) target = $region20
        $region19: #{tpu_custom_call.1} parent=11 // pred_region
          %s306 = ssub.s32 128, 128
          %307 = vsyncadd [#allocation3], %s306
          %s308 = sshll.u32 [#allocation2], 4
          %s309 = int_to_ptr.vmem [resolvable:$true] %s308
          %314 = dma.hbm_to_vmem [thread:$0]  %s2, 128, %s309, [#allocation3], 64, 64, 4
        $region20: #{tpu_custom_call.1} parent=11 // pred_fallthru
          _
        // Predicated region
        $region21: #{tpu_custom_call.1} parent=11 // pred_check
          %p315 = pneg %p111
        $region22: #{tpu_custom_call.1} parent=11 // pred_check_branch
          %317 = sbr.rel (%p315) target = $region24
        $region23: #{tpu_custom_call.1} parent=11 // pred_region
          _
        $region24: #{tpu_custom_call.1} parent=11 // pred_fallthru
          _
        // Predicated region
        $region25: #{tpu_custom_call.1} parent=11 // pred_check
          %p318 = pneg %p132
        $region26: #{tpu_custom_call.1} parent=11 // pred_check_branch
          %320 = sbr.rel (%p318) target = $region28
        $region27: #{tpu_custom_call.1} parent=11 // pred_region
          _
        $region28: #{tpu_custom_call.1} parent=11 // pred_fallthru
          _
        // Predicated region
        $region29: #{tpu_custom_call.1} parent=11 // pred_check
          %p321 = pneg %p153
        $region30: #{tpu_custom_call.1} parent=11 // pred_check_branch
          %323 = sbr.rel (%p321) target = $region32
        $region31: #{tpu_custom_call.1} parent=11 // pred_region
          _
        $region32: #{tpu_custom_call.1} parent=11 // pred_fallthru
          _
        // Predicated region
        $region33: #{tpu_custom_call.1} parent=11 // pred_check
          %p324 = pneg %p174
        $region34: #{tpu_custom_call.1} parent=11 // pred_check_branch
          %326 = sbr.rel (%p324) target = $region36
        $region35: #{tpu_custom_call.1} parent=11 // pred_region
          %s328 = ssub.s32 16, 16
          %329 = vsyncadd [#allocation6], %s328
          %s331 = sshll.u32 [#allocation5], 4
          %s332 = int_to_ptr.vmem [resolvable:$true] %s331
          %334 = dma.hbm_to_vmem [thread:$0]  %s6, 16, %s332, [#allocation6]
        $region36: #{tpu_custom_call.1} parent=11 // pred_fallthru
          _
        // Predicated region
        $region37: #{tpu_custom_call.1} parent=11 // pred_check
          %p335 = pneg %p195
        $region38: #{tpu_custom_call.1} parent=11 // pred_check_branch
          %337 = sbr.rel (%p335) target = $region40
        $region39: #{tpu_custom_call.1} parent=11 // pred_region
          %s339 = ssub.s32 256, 256
          %340 = vsyncadd [#allocation6], %s339
          %s341 = sshll.u32 [#allocation7], 4
          %s342 = int_to_ptr.vmem [resolvable:$true] %s341
          %347 = dma.hbm_to_vmem [thread:$0]  %s7, 256, %s342, [#allocation6], 64, 64, 4
        $region40: #{tpu_custom_call.1} parent=11 // pred_fallthru
          _
        // Predicated region
        $region41: #{tpu_custom_call.1} parent=11 // pred_check
          %p348 = pneg %p216
        $region42: #{tpu_custom_call.1} parent=11 // pred_check_branch
          %350 = sbr.rel (%p348) target = $region44
        $region43: #{tpu_custom_call.1} parent=11 // pred_region
          _
        $region44: #{tpu_custom_call.1} parent=11 // pred_fallthru
          _
        // Predicated region
        $region45: #{tpu_custom_call.1} parent=11 // pred_check
          %p351 = pneg %p237
        $region46: #{tpu_custom_call.1} parent=11 // pred_check_branch
          %353 = sbr.rel (%p351) target = $region48
        $region47: #{tpu_custom_call.1} parent=11 // pred_region
          _
        $region48: #{tpu_custom_call.1} parent=11 // pred_fallthru
          _
        // Predicated region
        $region49: #{tpu_custom_call.1} parent=11 // pred_check
          %p354 = pneg %p258
        $region50: #{tpu_custom_call.1} parent=11 // pred_check_branch
          %356 = sbr.rel (%p354) target = $region52
        $region51: #{tpu_custom_call.1} parent=11 // pred_region
          _
        $region52: #{tpu_custom_call.1} parent=11 // pred_fallthru
          _
      $region12: #{tpu_custom_call.1} parent=5 // pred_fallthru
        _
      %p357 = scmp.lt.s32.totalorder %s22, 2
      // Predicated region
      $region53: #{tpu_custom_call.1} parent=5 // pred_check
        %p358 = pneg %p357
      $region54: #{tpu_custom_call.1} parent=5 // pred_check_branch
        %360 = sbr.rel (%p358) target = $region56
      $region55: #{tpu_custom_call.1} parent=5 // pred_region
        // Predicated region
        $region57: #{tpu_custom_call.1} parent=55 // pred_check
          %p361 = pneg %p42
        $region58: #{tpu_custom_call.1} parent=55 // pred_check_branch
          %363 = sbr.rel (%p361) target = $region60
        $region59: #{tpu_custom_call.1} parent=55 // pred_region
          %p364 = scmp.lt.s32.totalorder %s22, 1
          %s365 = scalar_select %p364, %s22, 1
          %s366 = smul.addr %s365, 2
          %s367 = smul.addr %s366, 4
          %s368 = scalar_lea.vmem %s0, %s367
        $region60: #{tpu_custom_call.1} parent=55 // pred_fallthru
          _
      $region56: #{tpu_custom_call.1} parent=5 // pred_fallthru
        _
      %p369 = scmp.le.s32.totalorder 1, %s22
      %p370 = scmp.lt.s32.totalorder %s22, 3
      %p371 = pnand %p369, %p370
      %p372 = pneg %p371
      // Predicated region
      $region61: #{tpu_custom_call.1} parent=5 // pred_check
        _
      $region62: #{tpu_custom_call.1} parent=5 // pred_check_branch
        %374 = sbr.rel (%p371) target = $region64
      $region63: #{tpu_custom_call.1} parent=5 // pred_region
        %s375 = ssub.s32 %s22, 1
        // Predicated region
        $region65: #{tpu_custom_call.1} parent=63 // pred_check
          %p376 = pneg %p90
        $region66: #{tpu_custom_call.1} parent=63 // pred_check_branch
          %378 = sbr.rel (%p376) target = $region68
        $region67: #{tpu_custom_call.1} parent=63 // pred_region
          %379 = dma.done [#allocation3], 128
        $region68: #{tpu_custom_call.1} parent=63 // pred_fallthru
          _
        // Predicated region
        $region69: #{tpu_custom_call.1} parent=63 // pred_check
          %p380 = pneg %p174
        $region70: #{tpu_custom_call.1} parent=63 // pred_check_branch
          %382 = sbr.rel (%p380) target = $region72
        $region71: #{tpu_custom_call.1} parent=63 // pred_region
          %383 = dma.done [#allocation6], 16
        $region72: #{tpu_custom_call.1} parent=63 // pred_fallthru
          _
        // Predicated region
        $region73: #{tpu_custom_call.1} parent=63 // pred_check
          %p384 = pneg %p195
        $region74: #{tpu_custom_call.1} parent=63 // pred_check_branch
          %386 = sbr.rel (%p384) target = $region76
        $region75: #{tpu_custom_call.1} parent=63 // pred_region
          %387 = dma.done [#allocation6], 256
        $region76: #{tpu_custom_call.1} parent=63 // pred_fallthru
          _
        %p388 = scmp.lt.s32.totalorder %s27, 1
        %s389 = scalar_select %p388, %s27, 1
        %s390 = smul.addr %s389, 2
        %s391 = smul.addr %s390, 4
        %s392 = scalar_lea.vmem %s0, %s391
        %p393 = pneg %p48
        %p394 = pneg %p45
        %p395 = pneg %p69
        %p396 = pneg %p66
        %p397 = pneg %p90
        %p398 = pneg %p87
        %p399 = pneg %p111
        %p400 = pneg %p108
        %p401 = pneg %p132
        %p402 = pneg %p129
        %p403 = pneg %p153
        %p404 = pneg %p150
        %p405 = pneg %p174
        %p406 = pneg %p171
        %p407 = pneg %p195
        %p408 = pneg %p192
        %p409 = pneg %p216
        %p410 = pneg %p213
        %p411 = pneg %p237
        %p412 = pneg %p234
        %p413 = pneg %p258
        %p414 = pneg %p255
        %p415 = pneg %p284
        %p416 = pneg %p281
        %s417 = sand.u32 %s271, 1
        %s418 = scalar_lea.sflag [#allocation4], %s417
        %s419 = sand.u32 %s271, 1
        %s420 = scalar_lea.vmem [#allocation8], %s419
        %p421 = scmp.lt.s32.totalorder %s27, 1
        %s422 = scalar_select %p421, %s27, 1
        %s423 = smul.addr %s422, 2
        %s424 = smul.addr %s423, 4
        %s425 = scalar_lea.vmem %s0, %s424
        %v427 = vld [vmem:[%s425] sm:$0xf]
        %v428 = vld [vmem:[%s425 + $0x4] sm:$0xf]
        %v429 = vunpack.c.l.bf16 %v427
        %v430 = vunpack.c.l.bf16 %v428
        %vm431 = vcmask 261120
        %v432 = vsel %vm431, %v429, 0.0
        %v433 = vsel %vm431, %v430, 0.0
        %v434 = vadd.f32 %v432, %v433
        %v435 = vrot.slane %v434, 4
        %v436 = vadd.f32 %v434, %v435
        %v437 = vrot.slane %v436, 2
        %v438 = vadd.f32 %v436, %v437
        %v439 = vrot.slane %v438, 1
        %v440 = vadd.f32 %v438, %v439
        %v441 = vmul.f32 %v440, 0.0625
        %v442 = vld [vmem:[%s1] sm:$0x1]
        %v443 = vadd.f32 %v441, %v442
        %v444 = vpack.c.bf16 %v443, %v443
        %v445 = vld [vmem:[#allocation2] sm:$0xf]
        %v446 = vld [vmem:[#allocation2 + $0x4] sm:$0xf]
        %v447 = vadd.bf16 %v427, %v445
        %v448 = vadd.bf16 %v428, %v446
        %v449 = vld [vmem:[%s3] sm:$0xf]
        %v450 = vld [vmem:[%s3 + $0x4] sm:$0xf]
        %v451 = vld [vmem:[%s3 + $0x8] sm:$0xf]
        %v452 = vld [vmem:[%s3 + $0xc] sm:$0xf]
        %v453 = vld [vmem:[%s4] sm:$0x1]
        %v458 = vunpack.c.l.b16 %v449
        %v459 = vunpack.c.l.b16 %v450
        %v460 = vunpack.c.l.b16 %v451
        %v461 = vunpack.c.l.b16 %v452
        %v462 = vpack.c.b16 %v459, %v458
        %v463 = vpack.c.b16 %v461, %v460
        %v467 = vsel %vm431, %v444, 0
        %469 = vmatprep.subr.bf16.mxu0 0
        %470 = vmatpush1.bf16.msra.mxu0 %v462
        %471 = vmatprep.subr.bf16.mxu0 0
        %472 = vmatpush1.bf16.msra.mxu0 %v463
        %473 = vmatprep.subr.bf16.mxu0 0
        %474 = vmatpush1.bf16.msra.mxu0 0
        %475 = vmatprep.subr.bf16.mxu0 0
        %476 = vmatpush1.bf16.msra.mxu0 0
        %477 = vmatprep.subr.bf16.mxu0 0
        %478 = vmatpush1.bf16.msra.mxu0 0
        %479 = vmatprep.subr.bf16.mxu0 0
        %480 = vmatpush1.bf16.msra.mxu0 0
        %481 = vmatprep.subr.bf16.mxu0 0
        %482 = vmatpush1.bf16.msra.mxu0 0
        %483 = vmatprep.subr.bf16.mxu0 0
        %484 = vmatpush1.bf16.msra.mxu0 0
        %485 = vmatprep.subr.bf16.mxu0 0
        %486 = vmatpush1.bf16.msra.mxu0 0
        %487 = vmatprep.subr.bf16.mxu0 0
        %488 = vmatpush1.bf16.msra.mxu0 0
        %489 = vmatprep.subr.bf16.mxu0 0
        %490 = vmatpush1.bf16.msra.mxu0 0
        %491 = vmatprep.subr.bf16.mxu0 0
        %492 = vmatpush1.bf16.msra.mxu0 0
        %493 = vmatprep.subr.bf16.mxu0 0
        %494 = vmatpush1.bf16.msra.mxu0 0
        %495 = vmatprep.subr.bf16.mxu0 0
        %496 = vmatpush1.bf16.msra.mxu0 0
        %497 = vmatprep.subr.bf16.mxu0 0
        %498 = vmatpush1.bf16.msra.mxu0 0
        %499 = vmatprep.subr.bf16.mxu0 0
        %500 = vmatpush1.bf16.msra.mxu0 0
        %501 = vmatprep.mubr.bf16.mxu0 0
        %502 = vmatmul.mubr.bf16.gmra.mrb[0].mxu0 %v467
        %v503 = vpop.f32.mrb[0].mxu0
        %v504 = vadd.f32 %v453, %v503
        %v505 = vpop.f32.mrb[0].mxu0
        %v506 = vpop.f32.mrb[0].mxu0
        %v507 = vpop.f32.mrb[0].mxu0
        %508 = vdwg.mxu0
        %v509 = vld [vmem:[%s5] sm:$0xf]
        %v510 = vld [vmem:[%s5 + $0x4] sm:$0xf]
        %v511 = vld [vmem:[%s5 + $0x8] sm:$0xf]
        %v512 = vld [vmem:[%s5 + $0xc] sm:$0xf]
        %v513 = vld [vmem:[#allocation5] sm:$0x1]
        %v515 = vlaneseq
        %v516 = vshrl.u32 %v515, 7
        %v517 = vsub.s32 0, %v516
        %v518 = vrot.slane %v513, %v517
        %v522 = vunpack.c.l.b16 %v447
        %v523 = vunpack.c.l.b16 %v448
        %v524 = vpack.c.b16 %v523, %v522
        %v529 = vunpack.c.l.b16 %v509
        %v530 = vunpack.c.l.b16 %v510
        %v531 = vunpack.c.l.b16 %v511
        %v532 = vunpack.c.l.b16 %v512
        %v533 = vpack.c.b16 %v530, %v529
        %v534 = vpack.c.b16 %v532, %v531
        %v538 = vsel %vm431, %v524, 0
        %540 = vmatprep.subr.bf16.mxu0 0
        %541 = vmatpush1.bf16.msra.mxu0 %v533
        %542 = vmatprep.subr.bf16.mxu0 0
        %543 = vmatpush1.bf16.msra.mxu0 %v534
        %544 = vmatprep.subr.bf16.mxu0 0
        %545 = vmatpush1.bf16.msra.mxu0 0
        %546 = vmatprep.subr.bf16.mxu0 0
        %547 = vmatpush1.bf16.msra.mxu0 0
        %548 = vmatprep.subr.bf16.mxu0 0
        %549 = vmatpush1.bf16.msra.mxu0 0
        %550 = vmatprep.subr.bf16.mxu0 0
        %551 = vmatpush1.bf16.msra.mxu0 0
        %552 = vmatprep.subr.bf16.mxu0 0
        %553 = vmatpush1.bf16.msra.mxu0 0
        %554 = vmatprep.subr.bf16.mxu0 0
        %555 = vmatpush1.bf16.msra.mxu0 0
        %556 = vmatprep.subr.bf16.mxu0 0
        %557 = vmatpush1.bf16.msra.mxu0 0
        %558 = vmatprep.subr.bf16.mxu0 0
        %559 = vmatpush1.bf16.msra.mxu0 0
        %560 = vmatprep.subr.bf16.mxu0 0
        %561 = vmatpush1.bf16.msra.mxu0 0
        %562 = vmatprep.subr.bf16.mxu0 0
        %563 = vmatpush1.bf16.msra.mxu0 0
        %564 = vmatprep.subr.bf16.mxu0 0
        %565 = vmatpush1.bf16.msra.mxu0 0
        %566 = vmatprep.subr.bf16.mxu0 0
        %567 = vmatpush1.bf16.msra.mxu0 0
        %568 = vmatprep.subr.bf16.mxu0 0
        %569 = vmatpush1.bf16.msra.mxu0 0
        %570 = vmatprep.subr.bf16.mxu0 0
        %571 = vmatpush1.bf16.msra.mxu0 0
        %572 = vmatprep.mubr.bf16.mxu0 0
        %573 = vmatmul.mubr.bf16.gmra.mrb[0].mxu0 %v538
        %v574 = vpop.f32.mrb[0].mxu0
        %v575 = vadd.f32 %v518, %v574
        %v576 = vpop.f32.mrb[0].mxu0
        %v577 = vpop.f32.mrb[0].mxu0
        %v578 = vadd.f32 %v518, %v577
        %v579 = vpop.f32.mrb[0].mxu0
        %580 = vdwg.mxu0
        %582 = vrot.lane.b32.xlu0 %v504, 96
        %v583 = vpop.permute.xlu0 %582
        %v585 = vmul.f32 %v504, %v583
        %v586 = vld [vmem:[%s9] sm:$0xff]
        %v587 = vld [vmem:[%s9 + $0x8] sm:$0xff]
        %v588 = vld [vmem:[%s9 + $0x10] sm:$0xff]
        %v589 = vld [vmem:[%s9 + $0x18] sm:$0xff]
        %v591 = vsel %vm431, %v585, 0
        %593 = vmatprep.subr.mxu0 0.0
        %594 = vmatpush1.msra.mxu0 %v586
        %595 = vmatprep.subr.mxu0 0.0
        %596 = vmatpush1.msra.mxu0 %v587
        %597 = vmatprep.subr.mxu0 0.0
        %598 = vmatpush1.msra.mxu0 %v588
        %599 = vmatprep.subr.mxu0 0.0
        %600 = vmatpush1.msra.mxu0 %v589
        %601 = vmatprep.subr.mxu0 0.0
        %602 = vmatpush1.msra.mxu0 0.0
        %603 = vmatprep.subr.mxu0 0.0
        %604 = vmatpush1.msra.mxu0 0.0
        %605 = vmatprep.subr.mxu0 0.0
        %606 = vmatpush1.msra.mxu0 0.0
        %607 = vmatprep.subr.mxu0 0.0
        %608 = vmatpush1.msra.mxu0 0.0
        %609 = vmatprep.subr.mxu0 0.0
        %610 = vmatpush1.msra.mxu0 0.0
        %611 = vmatprep.subr.mxu0 0.0
        %612 = vmatpush1.msra.mxu0 0.0
        %613 = vmatprep.subr.mxu0 0.0
        %614 = vmatpush1.msra.mxu0 0.0
        %615 = vmatprep.subr.mxu0 0.0
        %616 = vmatpush1.msra.mxu0 0.0
        %617 = vmatprep.subr.mxu0 0.0
        %618 = vmatpush1.msra.mxu0 0.0
        %619 = vmatprep.subr.mxu0 0.0
        %620 = vmatpush1.msra.mxu0 0.0
        %621 = vmatprep.subr.mxu0 0.0
        %622 = vmatpush1.msra.mxu0 0.0
        %623 = vmatprep.subr.mxu0 0.0
        %624 = vmatpush1.msra.mxu0 0.0
        %625 = vmatprep.subr.mxu0 0.0
        %626 = vmatpush1.msra.mxu0 0.0
        %627 = vmatprep.subr.mxu0 0.0
        %628 = vmatpush1.msra.mxu0 0.0
        %629 = vmatprep.subr.mxu0 0.0
        %630 = vmatpush1.msra.mxu0 0.0
        %631 = vmatprep.subr.mxu0 0.0
        %632 = vmatpush1.msra.mxu0 0.0
        %633 = vmatprep.subr.mxu0 0.0
        %634 = vmatpush1.msra.mxu0 0.0
        %635 = vmatprep.subr.mxu0 0.0
        %636 = vmatpush1.msra.mxu0 0.0
        %637 = vmatprep.subr.mxu0 0.0
        %638 = vmatpush1.msra.mxu0 0.0
        %639 = vmatprep.subr.mxu0 0.0
        %640 = vmatpush1.msra.mxu0 0.0
        %641 = vmatprep.subr.mxu0 0.0
        %642 = vmatpush1.msra.mxu0 0.0
        %643 = vmatprep.subr.mxu0 0.0
        %644 = vmatpush1.msra.mxu0 0.0
        %645 = vmatprep.subr.mxu0 0.0
        %646 = vmatpush1.msra.mxu0 0.0
        %647 = vmatprep.subr.mxu0 0.0
        %648 = vmatpush1.msra.mxu0 0.0
        %649 = vmatprep.subr.mxu0 0.0
        %650 = vmatpush1.msra.mxu0 0.0
        %651 = vmatprep.subr.mxu0 0.0
        %652 = vmatpush1.msra.mxu0 0.0
        %653 = vmatprep.subr.mxu0 0.0
        %654 = vmatpush1.msra.mxu0 0.0
        %655 = vmatprep.subr.mxu0 0.0
        %656 = vmatpush1.msra.mxu0 0.0
        %657 = vmatprep.mubr.f32.mxu0 0.0
        %658 = vmatmul.mubr.f32.gmra.mrb[0].mxu0 %v591
        %v659 = vpop.f32.mrb[0].mxu0
        %v660 = vadd.f32 0.0, %v659
        %v661 = vpop.f32.mrb[0].mxu0
        %662 = vdwg.mxu0
        %v663 = vlaneseq
        %v664 = vshrl.u32 %v663, 7
        %v665 = vsub.s32 0, %v664
        %v666 = vrot.slane %v504, %v665
        %v667 = vmul.f32 %v666, %v575
        %v668 = vmul.f32 %v666, %v578
        %v670 = vsel %vm431, %v667, 0
        %v673 = vsel %vm431, %v668, 0
        %675 = vmatprep.subr.mxu0 0.0
        %676 = vmatpush1.msra.mxu0 %v586
        %677 = vmatprep.subr.mxu0 0.0
        %678 = vmatpush1.msra.mxu0 %v587
        %679 = vmatprep.subr.mxu0 0.0
        %680 = vmatpush1.msra.mxu0 %v588
        %681 = vmatprep.subr.mxu0 0.0
        %682 = vmatpush1.msra.mxu0 %v589
        %683 = vmatprep.subr.mxu0 0.0
        %684 = vmatpush1.msra.mxu0 0.0
        %685 = vmatprep.subr.mxu0 0.0
        %686 = vmatpush1.msra.mxu0 0.0
        %687 = vmatprep.subr.mxu0 0.0
        %688 = vmatpush1.msra.mxu0 0.0
        %689 = vmatprep.subr.mxu0 0.0
        %690 = vmatpush1.msra.mxu0 0.0
        %691 = vmatprep.subr.mxu0 0.0
        %692 = vmatpush1.msra.mxu0 0.0
        %693 = vmatprep.subr.mxu0 0.0
        %694 = vmatpush1.msra.mxu0 0.0
        %695 = vmatprep.subr.mxu0 0.0
        %696 = vmatpush1.msra.mxu0 0.0
        %697 = vmatprep.subr.mxu0 0.0
        %698 = vmatpush1.msra.mxu0 0.0
        %699 = vmatprep.subr.mxu0 0.0
        %700 = vmatpush1.msra.mxu0 0.0
        %701 = vmatprep.subr.mxu0 0.0
        %702 = vmatpush1.msra.mxu0 0.0
        %703 = vmatprep.subr.mxu0 0.0
        %704 = vmatpush1.msra.mxu0 0.0
        %705 = vmatprep.subr.mxu0 0.0
        %706 = vmatpush1.msra.mxu0 0.0
        %707 = vmatprep.subr.mxu0 0.0
        %708 = vmatpush1.msra.mxu0 0.0
        %709 = vmatprep.subr.mxu0 0.0
        %710 = vmatpush1.msra.mxu0 0.0
        %711 = vmatprep.subr.mxu0 0.0
        %712 = vmatpush1.msra.mxu0 0.0
        %713 = vmatprep.subr.mxu0 0.0
        %714 = vmatpush1.msra.mxu0 0.0
        %715 = vmatprep.subr.mxu0 0.0
        %716 = vmatpush1.msra.mxu0 0.0
        %717 = vmatprep.subr.mxu0 0.0
        %718 = vmatpush1.msra.mxu0 0.0
        %719 = vmatprep.subr.mxu0 0.0
        %720 = vmatpush1.msra.mxu0 0.0
        %721 = vmatprep.subr.mxu0 0.0
        %722 = vmatpush1.msra.mxu0 0.0
        %723 = vmatprep.subr.mxu0 0.0
        %724 = vmatpush1.msra.mxu0 0.0
        %725 = vmatprep.subr.mxu0 0.0
        %726 = vmatpush1.msra.mxu0 0.0
        %727 = vmatprep.subr.mxu0 0.0
        %728 = vmatpush1.msra.mxu0 0.0
        %729 = vmatprep.subr.mxu0 0.0
        %730 = vmatpush1.msra.mxu0 0.0
        %731 = vmatprep.subr.mxu0 0.0
        %732 = vmatpush1.msra.mxu0 0.0
        %733 = vmatprep.subr.mxu0 0.0
        %734 = vmatpush1.msra.mxu0 0.0
        %735 = vmatprep.subr.mxu0 0.0
        %736 = vmatpush1.msra.mxu0 0.0
        %737 = vmatprep.subr.mxu0 0.0
        %738 = vmatpush1.msra.mxu0 0.0
        %739 = vmatprep.mubr.f32.mxu0 0.0
        %740 = vmatmul.mubr.f32.gmra.mrb[0].mxu0 %v670
        %v741 = vpop.f32.mrb[0].mxu0
        %v742 = vadd.f32 0.0, %v741
        %v743 = vpop.f32.mrb[0].mxu0
        %744 = vmatprep.mubr.f32.mxu0 0.0
        %745 = vmatmul.mubr.f32.gmra.mrb[0].mxu0 %v673
        %v746 = vpop.f32.mrb[0].mxu0
        %v747 = vadd.f32 0.0, %v746
        %v748 = vpop.f32.mrb[0].mxu0
        %749 = vdwg.mxu0
        %vm750 = vcmask 31744
        %v751 = vsel %vm750, %v742, -inf
        %v752 = vsel %vm750, %v747, -inf
        %v753 = vmax.f32 %v751, %v752
        %v754 = vrot.slane %v753, 4
        %v755 = vmax.f32 %v753, %v754
        %v756 = vrot.slane %v755, 2
        %v757 = vmax.f32 %v755, %v756
        %v758 = vrot.slane %v757, 1
        %v759 = vmax.f32 %v757, %v758
        %v760 = vmax.f32 %v660, %v759
        %v761 = vsub.f32 %v660, %v760
        %v762 = vmul.f32 %v761, 1.442695
        %v763 = vpow.pop %v762
        %v764 = vlaneseq
        %v765 = vshrl.u32 %v764, 7
        %v766 = vsub.s32 0, %v765
        %v767 = vrot.slane %v760, %v766
        %v768 = vsub.f32 %v742, %v767
        %v769 = vsub.f32 %v747, %v767
        %v770 = vmul.f32 %v768, 1.442695
        %v771 = vpow.pop %v770
        %v772 = vmul.f32 %v769, 1.442695
        %v773 = vpow.pop %v772
        %v774 = vsel %vm750, %v771, 0.0
        %v775 = vsel %vm750, %v773, 0.0
        %v776 = vadd.f32 %v774, %v775
        %v777 = vrot.slane %v776, 4
        %v778 = vadd.f32 %v776, %v777
        %v779 = vrot.slane %v778, 2
        %v780 = vadd.f32 %v778, %v779
        %v781 = vrot.slane %v780, 1
        %v782 = vadd.f32 %v780, %v781
        %v783 = vadd.f32 %v763, %v782
        %v784 = vrcp.pop %v783
        %v785 = vld [vmem:[%s10] sm:$0xf]
        %v787 = vsel %vm750, %v763, 0
        %vm789 = vcmask 1043456
        %v791 = vsel %vm789, %v785, 0
        %793 = vmatprep.subr.mxu0 0.0
        %794 = vmatpush1.msra.mxu0 %v791
        %795 = vmatprep.subr.mxu0 0.0
        %796 = vmatpush1.msra.mxu0 0.0
        %797 = vmatprep.subr.mxu0 0.0
        %798 = vmatpush1.msra.mxu0 0.0
        %799 = vmatprep.subr.mxu0 0.0
        %800 = vmatpush1.msra.mxu0 0.0
        %801 = vmatprep.subr.mxu0 0.0
        %802 = vmatpush1.msra.mxu0 0.0
        %803 = vmatprep.subr.mxu0 0.0
        %804 = vmatpush1.msra.mxu0 0.0
        %805 = vmatprep.subr.mxu0 0.0
        %806 = vmatpush1.msra.mxu0 0.0
        %807 = vmatprep.subr.mxu0 0.0
        %808 = vmatpush1.msra.mxu0 0.0
        %809 = vmatprep.subr.mxu0 0.0
        %810 = vmatpush1.msra.mxu0 0.0
        %811 = vmatprep.subr.mxu0 0.0
        %812 = vmatpush1.msra.mxu0 0.0
        %813 = vmatprep.subr.mxu0 0.0
        %814 = vmatpush1.msra.mxu0 0.0
        %815 = vmatprep.subr.mxu0 0.0
        %816 = vmatpush1.msra.mxu0 0.0
        %817 = vmatprep.subr.mxu0 0.0
        %818 = vmatpush1.msra.mxu0 0.0
        %819 = vmatprep.subr.mxu0 0.0
        %820 = vmatpush1.msra.mxu0 0.0
        %821 = vmatprep.subr.mxu0 0.0
        %822 = vmatpush1.msra.mxu0 0.0
        %823 = vmatprep.subr.mxu0 0.0
        %824 = vmatpush1.msra.mxu0 0.0
        %825 = vmatprep.subr.mxu0 0.0
        %826 = vmatpush1.msra.mxu0 0.0
        %827 = vmatprep.subr.mxu0 0.0
        %828 = vmatpush1.msra.mxu0 0.0
        %829 = vmatprep.subr.mxu0 0.0
        %830 = vmatpush1.msra.mxu0 0.0
        %831 = vmatprep.subr.mxu0 0.0
        %832 = vmatpush1.msra.mxu0 0.0
        %833 = vmatprep.subr.mxu0 0.0
        %834 = vmatpush1.msra.mxu0 0.0
        %835 = vmatprep.subr.mxu0 0.0
        %836 = vmatpush1.msra.mxu0 0.0
        %837 = vmatprep.subr.mxu0 0.0
        %838 = vmatpush1.msra.mxu0 0.0
        %839 = vmatprep.subr.mxu0 0.0
        %840 = vmatpush1.msra.mxu0 0.0
        %841 = vmatprep.subr.mxu0 0.0
        %842 = vmatpush1.msra.mxu0 0.0
        %843 = vmatprep.subr.mxu0 0.0
        %844 = vmatpush1.msra.mxu0 0.0
        %845 = vmatprep.subr.mxu0 0.0
        %846 = vmatpush1.msra.mxu0 0.0
        %847 = vmatprep.subr.mxu0 0.0
        %848 = vmatpush1.msra.mxu0 0.0
        %849 = vmatprep.subr.mxu0 0.0
        %850 = vmatpush1.msra.mxu0 0.0
        %851 = vmatprep.subr.mxu0 0.0
        %852 = vmatpush1.msra.mxu0 0.0
        %853 = vmatprep.subr.mxu0 0.0
        %854 = vmatpush1.msra.mxu0 0.0
        %855 = vmatprep.subr.mxu0 0.0
        %856 = vmatpush1.msra.mxu0 0.0
        %857 = vmatprep.mubr.f32.mxu0 0.0
        %858 = vmatmul.mubr.f32.gmra.mrb[0].mxu0 %v787
        %v859 = vpop.f32.mrb[0].mxu0
        %v860 = vadd.f32 0.0, %v859
        %v861 = vpop.f32.mrb[0].mxu0
        %862 = vdwg.mxu0
        %v864 = vsel %vm750, %v771, 0
        %v867 = vsel %vm750, %v773, 0
        %869 = vmatprep.subr.mxu0 0.0
        %870 = vmatpush1.msra.mxu0 %v791
        %871 = vmatprep.subr.mxu0 0.0
        %872 = vmatpush1.msra.mxu0 0.0
        %873 = vmatprep.subr.mxu0 0.0
        %874 = vmatpush1.msra.mxu0 0.0
        %875 = vmatprep.subr.mxu0 0.0
        %876 = vmatpush1.msra.mxu0 0.0
        %877 = vmatprep.subr.mxu0 0.0
        %878 = vmatpush1.msra.mxu0 0.0
        %879 = vmatprep.subr.mxu0 0.0
        %880 = vmatpush1.msra.mxu0 0.0
        %881 = vmatprep.subr.mxu0 0.0
        %882 = vmatpush1.msra.mxu0 0.0
        %883 = vmatprep.subr.mxu0 0.0
        %884 = vmatpush1.msra.mxu0 0.0
        %885 = vmatprep.subr.mxu0 0.0
        %886 = vmatpush1.msra.mxu0 0.0
        %887 = vmatprep.subr.mxu0 0.0
        %888 = vmatpush1.msra.mxu0 0.0
        %889 = vmatprep.subr.mxu0 0.0
        %890 = vmatpush1.msra.mxu0 0.0
        %891 = vmatprep.subr.mxu0 0.0
        %892 = vmatpush1.msra.mxu0 0.0
        %893 = vmatprep.subr.mxu0 0.0
        %894 = vmatpush1.msra.mxu0 0.0
        %895 = vmatprep.subr.mxu0 0.0
        %896 = vmatpush1.msra.mxu0 0.0
        %897 = vmatprep.subr.mxu0 0.0
        %898 = vmatpush1.msra.mxu0 0.0
        %899 = vmatprep.subr.mxu0 0.0
        %900 = vmatpush1.msra.mxu0 0.0
        %901 = vmatprep.subr.mxu0 0.0
        %902 = vmatpush1.msra.mxu0 0.0
        %903 = vmatprep.subr.mxu0 0.0
        %904 = vmatpush1.msra.mxu0 0.0
        %905 = vmatprep.subr.mxu0 0.0
        %906 = vmatpush1.msra.mxu0 0.0
        %907 = vmatprep.subr.mxu0 0.0
        %908 = vmatpush1.msra.mxu0 0.0
        %909 = vmatprep.subr.mxu0 0.0
        %910 = vmatpush1.msra.mxu0 0.0
        %911 = vmatprep.subr.mxu0 0.0
        %912 = vmatpush1.msra.mxu0 0.0
        %913 = vmatprep.subr.mxu0 0.0
        %914 = vmatpush1.msra.mxu0 0.0
        %915 = vmatprep.subr.mxu0 0.0
        %916 = vmatpush1.msra.mxu0 0.0
        %917 = vmatprep.subr.mxu0 0.0
        %918 = vmatpush1.msra.mxu0 0.0
        %919 = vmatprep.subr.mxu0 0.0
        %920 = vmatpush1.msra.mxu0 0.0
        %921 = vmatprep.subr.mxu0 0.0
        %922 = vmatpush1.msra.mxu0 0.0
        %923 = vmatprep.subr.mxu0 0.0
        %924 = vmatpush1.msra.mxu0 0.0
        %925 = vmatprep.subr.mxu0 0.0
        %926 = vmatpush1.msra.mxu0 0.0
        %927 = vmatprep.subr.mxu0 0.0
        %928 = vmatpush1.msra.mxu0 0.0
        %929 = vmatprep.subr.mxu0 0.0
        %930 = vmatpush1.msra.mxu0 0.0
        %931 = vmatprep.subr.mxu0 0.0
        %932 = vmatpush1.msra.mxu0 0.0
        %933 = vmatprep.mubr.f32.mxu0 0.0
        %934 = vmatmul.mubr.f32.gmra.mrb[0].mxu0 %v864
        %v935 = vpop.f32.mrb[0].mxu0
        %v936 = vadd.f32 0.0, %v935
        %v937 = vpop.f32.mrb[0].mxu0
        %938 = vmatprep.mubr.f32.mxu0 0.0
        %939 = vmatmul.mubr.f32.gmra.mrb[0].mxu0 %v867
        %v940 = vpop.f32.mrb[0].mxu0
        %v941 = vadd.f32 0.0, %v940
        %v942 = vpop.f32.mrb[0].mxu0
        %943 = vdwg.mxu0
        %944 = vrot.lane.b32.xlu0 %v504, 64
        %v945 = vpop.permute.xlu0 %944
        %v947 = vmul.f32 %v860, %v945
        %950 = vrot.lane.b32.xlu0 %v575, 96
        %v951 = vpop.permute.xlu0 %950
        %952 = vrot.lane.b32.xlu0 %v578, 96
        %v953 = vpop.permute.xlu0 %952
        %v956 = vmul.f32 %v936, %v951
        %v957 = vmul.f32 %v941, %v953
        %v958 = vsel %vm431, %v956, 0.0
        %v959 = vsel %vm431, %v957, 0.0
        %v960 = vadd.f32 %v958, %v959
        %v961 = vrot.slane %v960, 4
        %v962 = vadd.f32 %v960, %v961
        %v963 = vrot.slane %v962, 2
        %v964 = vadd.f32 %v962, %v963
        %v965 = vrot.slane %v964, 1
        %v966 = vadd.f32 %v964, %v965
        %v967 = vadd.f32 %v947, %v966
        %v969 = vsel %vm750, %v784, 0
        %971 = vmatprep.subr.mxu0 0.0
        %972 = vmatpush1.msra.mxu0 %v791
        %973 = vmatprep.subr.mxu0 0.0
        %974 = vmatpush1.msra.mxu0 0.0
        %975 = vmatprep.subr.mxu0 0.0
        %976 = vmatpush1.msra.mxu0 0.0
        %977 = vmatprep.subr.mxu0 0.0
        %978 = vmatpush1.msra.mxu0 0.0
        %979 = vmatprep.subr.mxu0 0.0
        %980 = vmatpush1.msra.mxu0 0.0
        %981 = vmatprep.subr.mxu0 0.0
        %982 = vmatpush1.msra.mxu0 0.0
        %983 = vmatprep.subr.mxu0 0.0
        %984 = vmatpush1.msra.mxu0 0.0
        %985 = vmatprep.subr.mxu0 0.0
        %986 = vmatpush1.msra.mxu0 0.0
        %987 = vmatprep.subr.mxu0 0.0
        %988 = vmatpush1.msra.mxu0 0.0
        %989 = vmatprep.subr.mxu0 0.0
        %990 = vmatpush1.msra.mxu0 0.0
        %991 = vmatprep.subr.mxu0 0.0
        %992 = vmatpush1.msra.mxu0 0.0
        %993 = vmatprep.subr.mxu0 0.0
        %994 = vmatpush1.msra.mxu0 0.0
        %995 = vmatprep.subr.mxu0 0.0
        %996 = vmatpush1.msra.mxu0 0.0
        %997 = vmatprep.subr.mxu0 0.0
        %998 = vmatpush1.msra.mxu0 0.0
        %999 = vmatprep.subr.mxu0 0.0
        %1000 = vmatpush1.msra.mxu0 0.0
        %1001 = vmatprep.subr.mxu0 0.0
        %1002 = vmatpush1.msra.mxu0 0.0
        %1003 = vmatprep.subr.mxu0 0.0
        %1004 = vmatpush1.msra.mxu0 0.0
        %1005 = vmatprep.subr.mxu0 0.0
        %1006 = vmatpush1.msra.mxu0 0.0
        %1007 = vmatprep.subr.mxu0 0.0
        %1008 = vmatpush1.msra.mxu0 0.0
        %1009 = vmatprep.subr.mxu0 0.0
        %1010 = vmatpush1.msra.mxu0 0.0
        %1011 = vmatprep.subr.mxu0 0.0
        %1012 = vmatpush1.msra.mxu0 0.0
        %1013 = vmatprep.subr.mxu0 0.0
        %1014 = vmatpush1.msra.mxu0 0.0
        %1015 = vmatprep.subr.mxu0 0.0
        %1016 = vmatpush1.msra.mxu0 0.0
        %1017 = vmatprep.subr.mxu0 0.0
        %1018 = vmatpush1.msra.mxu0 0.0
        %1019 = vmatprep.subr.mxu0 0.0
        %1020 = vmatpush1.msra.mxu0 0.0
        %1021 = vmatprep.subr.mxu0 0.0
        %1022 = vmatpush1.msra.mxu0 0.0
        %1023 = vmatprep.subr.mxu0 0.0
        %1024 = vmatpush1.msra.mxu0 0.0
        %1025 = vmatprep.subr.mxu0 0.0
        %1026 = vmatpush1.msra.mxu0 0.0
        %1027 = vmatprep.subr.mxu0 0.0
        %1028 = vmatpush1.msra.mxu0 0.0
        %1029 = vmatprep.subr.mxu0 0.0
        %1030 = vmatpush1.msra.mxu0 0.0
        %1031 = vmatprep.subr.mxu0 0.0
        %1032 = vmatpush1.msra.mxu0 0.0
        %1033 = vmatprep.subr.mxu0 0.0
        %1034 = vmatpush1.msra.mxu0 0.0
        %1035 = vmatprep.mubr.f32.mxu0 0.0
        %1036 = vmatmul.mubr.f32.gmra.mrb[0].mxu0 %v969
        %v1037 = vpop.f32.mrb[0].mxu0
        %v1038 = vadd.f32 0.0, %v1037
        %v1039 = vpop.f32.mrb[0].mxu0
        %1040 = vdwg.mxu0
        %v1041 = vmul.f32 %v967, %v1038
        %v1042 = vpack.c.bf16 %v1041, %v1041
        %v1043 = vld [vmem:[#allocation7] sm:$0xf]
        %v1044 = vld [vmem:[#allocation7 + $0x4] sm:$0xf]
        %v1045 = vld [vmem:[#allocation7 + $0x8] sm:$0xf]
        %v1046 = vld [vmem:[#allocation7 + $0xc] sm:$0xf]
        %v1047 = vld [vmem:[%s8] sm:$0x1]
        %v1052 = vunpack.c.l.b16 %v1043
        %v1053 = vunpack.c.l.b16 %v1044
        %v1054 = vunpack.c.l.b16 %v1045
        %v1055 = vunpack.c.l.b16 %v1046
        %v1056 = vpack.c.b16 %v1053, %v1052
        %v1057 = vpack.c.b16 %v1055, %v1054
        %v1061 = vsel %vm431, %v1042, 0
        %1063 = vmatprep.subr.bf16.mxu0 0
        %1064 = vmatpush1.bf16.msra.mxu0 %v1056
        %1065 = vmatprep.subr.bf16.mxu0 0
        %1066 = vmatpush1.bf16.msra.mxu0 %v1057
        %1067 = vmatprep.subr.bf16.mxu0 0
        %1068 = vmatpush1.bf16.msra.mxu0 0
        %1069 = vmatprep.subr.bf16.mxu0 0
        %1070 = vmatpush1.bf16.msra.mxu0 0
        %1071 = vmatprep.subr.bf16.mxu0 0
        %1072 = vmatpush1.bf16.msra.mxu0 0
        %1073 = vmatprep.subr.bf16.mxu0 0
        %1074 = vmatpush1.bf16.msra.mxu0 0
        %1075 = vmatprep.subr.bf16.mxu0 0
        %1076 = vmatpush1.bf16.msra.mxu0 0
        %1077 = vmatprep.subr.bf16.mxu0 0
        %1078 = vmatpush1.bf16.msra.mxu0 0
        %1079 = vmatprep.subr.bf16.mxu0 0
        %1080 = vmatpush1.bf16.msra.mxu0 0
        %1081 = vmatprep.subr.bf16.mxu0 0
        %1082 = vmatpush1.bf16.msra.mxu0 0
        %1083 = vmatprep.subr.bf16.mxu0 0
        %1084 = vmatpush1.bf16.msra.mxu0 0
        %1085 = vmatprep.subr.bf16.mxu0 0
        %1086 = vmatpush1.bf16.msra.mxu0 0
        %1087 = vmatprep.subr.bf16.mxu0 0
        %1088 = vmatpush1.bf16.msra.mxu0 0
        %1089 = vmatprep.subr.bf16.mxu0 0
        %1090 = vmatpush1.bf16.msra.mxu0 0
        %1091 = vmatprep.subr.bf16.mxu0 0
        %1092 = vmatpush1.bf16.msra.mxu0 0
        %1093 = vmatprep.subr.bf16.mxu0 0
        %1094 = vmatpush1.bf16.msra.mxu0 0
        %1095 = vmatprep.mubr.bf16.mxu0 0
        %1096 = vmatmul.mubr.bf16.gmra.mrb[0].mxu0 %v1061
        %v1097 = vpop.f32.mrb[0].mxu0
        %v1098 = vadd.f32 %v1047, %v1097
        %v1099 = vpop.f32.mrb[0].mxu0
        %v1100 = vpop.f32.mrb[0].mxu0
        %v1101 = vpop.f32.mrb[0].mxu0
        %1102 = vdwg.mxu0
        %1103 = vst [vmem:[%s420] sm:$0x1] %v1098
        %s1104 = sand.u32 %s271, 1
        %s1105 = scalar_lea.sflag [#allocation4], %s1104
        %s1106 = sand.u32 %s271, 1
        %s1107 = scalar_lea.vmem [#allocation8], %s1106
        // Predicated region
        $region77: #{tpu_custom_call.1} parent=63 // pred_check
          %p1108 = pneg %p281
        $region78: #{tpu_custom_call.1} parent=63 // pred_check_branch
          %1110 = sbr.rel (%p1108) target = $region80
        $region79: #{tpu_custom_call.1} parent=63 // pred_region
          %s1112 = ssub.s32 16, 16
          %1113 = vsyncadd %s1105, %s1112
          %s1114 = smul.addr %s27, 16
          %s1115 = scalar_lea.hbm %s11, %s1114
          %s1117 = sshll.u32 %s1107, 4
          %s1118 = int_to_ptr.vmem [resolvable:$true] %s1117
          %1120 = dma.vmem_to_hbm [thread:$0]  %s1118, 16, %s1115, %s1105
        $region80: #{tpu_custom_call.1} parent=63 // pred_fallthru
          _
      $region64: #{tpu_custom_call.1} parent=5 // pred_fallthru
        _
      %p1121 = scmp.le.s32.totalorder 2, %s22
      // Predicated region
      $region81: #{tpu_custom_call.1} parent=5 // pred_check
        %p1122 = pneg %p1121
      $region82: #{tpu_custom_call.1} parent=5 // pred_check_branch
        %1124 = sbr.rel (%p1122) target = $region84
      $region83: #{tpu_custom_call.1} parent=5 // pred_region
        %s1125 = ssub.s32 %s22, 2
        // Predicated region
        $region85: #{tpu_custom_call.1} parent=83 // pred_check
          %p1126 = pneg %p287
        $region86: #{tpu_custom_call.1} parent=83 // pred_check_branch
          %1128 = sbr.rel (%p1126) target = $region88
        $region87: #{tpu_custom_call.1} parent=83 // pred_region
          %s1129 = sand.u32 %s272, 1
          %s1130 = scalar_lea.sflag [#allocation4], %s1129
          %s1131 = sand.u32 %s272, 1
          %s1132 = scalar_lea.vmem [#allocation8], %s1131
          %1133 = dma.done %s1130, 16
        $region88: #{tpu_custom_call.1} parent=83 // pred_fallthru
          _
      $region84: #{tpu_custom_call.1} parent=5 // pred_fallthru
        _
    $region6: #{tpu_custom_call.1} parent=1 // loop_footer
      %s26 = sadd.s32 1, %s22
    $region7: #{tpu_custom_call.1} parent=1 // loop_footer_branch
      %21 = sbr.rel target = $region3
    $region8: #{tpu_custom_call.1} parent=1 // loop_exit
      _
    %1134 = vsyncpa [#allocation3], 1
    %s1135 = scalar_lea.sflag [#allocation3], 1
    %1136 = vsyncpa %s1135, 1
    %1137 = vsyncpa [#allocation6], 1
    %1138 = vsyncpa [#allocation4], 1
    %s1139 = scalar_lea.sflag [#allocation4], 1
    %1140 = vsyncpa %s1139, 1

</llo_original>
